<compile_context>
chip_gen: v7x
topology: tpu7x:2x2x1
jax: 0.10.0
libtpu: 0.0.40
codegen_flags: <defaults>
</compile_context>

<pallas_src>
import jax
import jax.numpy as jnp
from jax.experimental import pallas as pl
from jax.experimental.pallas import tpu as pltpu


# ---------------------------------------------------------------------------
# Kernel
# ---------------------------------------------------------------------------
def _make_kernel(n_chan, n_feat, inv_hw):
    def kernel(x_ref, w_stem_ref, b_stem_ref, w_head_ref, b_head_ref,
               out_ref, acc_ref):
        sp = pl.program_id(1)                      # spatial tile index

        @pl.when(sp == 0)
        def _init():
            acc_ref[...] = jnp.zeros_like(acc_ref)

        x = x_ref[...]                             # (Bt, C, T) f32, T on lanes
        w_s = w_stem_ref[...]                      # (C, F, 1)

        # 1x1-conv stem with normalization folded into the weights.
        # C is tiny, so this is C broadcast multiply-adds on the VPU
        # (no K=3 MXU matmul):  (F,1) * (Bt,1,T) -> (Bt,F,T)
        feat = w_s[0] * x[:, 0:1, :]
        for c in range(1, n_chan):
            feat = feat + w_s[c] * x[:, c:c + 1, :]
        feat = jnp.maximum(feat + b_stem_ref[...], 0.0)   # bias (F,1), ReLU

        # Running spatial sum for the global average pool (lane reduce -> XLU).
        acc_ref[...] += jnp.sum(feat, axis=-1, keepdims=True)   # (Bt, F, 1)

        @pl.when(sp == pl.num_programs(1) - 1)
        def _finalize():
            pooled = acc_ref[...] * inv_hw         # (Bt, F, 1) pooled features
            w_head = w_head_ref[...]               # (F, NO_pad)
            # Fused cls+box head as F broadcast FMAs (static slices +
            # broadcasts only, no relayout):
            #   (Bt,1,1) * (1,NO_pad) -> (Bt,1,NO_pad)
            out = pooled[:, 0:1, :] * w_head[0:1, :]
            for f in range(1, n_feat):
                out = out + pooled[:, f:f + 1, :] * w_head[f:f + 1, :]
            out_ref[...] = out + b_head_ref[...]   # lane-dense (Bt,1,NO_pad)

    return kernel


# ---------------------------------------------------------------------------
# Parameter prep: fold channel flip + normalization, fuse the two heads.
# ---------------------------------------------------------------------------
def prepare_params(params, input_format="RGB"):
    mean, std, w_stem, b_stem, w_cls, b_cls, w_box, b_box = params
    if input_format == "RGB":
        # Model params are stored in BGR channel order; permute the (tiny)
        # params instead of flipping every image in HBM.
        mean, std, w_stem = mean[:, ::-1], std[:, ::-1], w_stem[::-1, :]

    # ((x - mean) / std) @ w + b  ==  x @ (w / std^T) + (b - (mean/std) @ w)
    w_eff = (w_stem / std.T).astype(jnp.float32)                     # (C, F)
    b_eff = (b_stem - (mean / std) @ w_stem).astype(jnp.float32)     # (1, F)

    # Fuse cls + box heads into one lane-dense, 128-padded slab.
    w_head = jnp.concatenate([w_cls, w_box], axis=1)                 # (F, NC+4)
    b_head = jnp.concatenate([b_cls, b_box], axis=1)                 # (1, NC+4)
    n_out = w_head.shape[1]
    n_out_pad = ((n_out + 127) // 128) * 128
    w_head = jnp.pad(w_head, ((0, 0), (0, n_out_pad - n_out))).astype(jnp.float32)
    b_head = jnp.pad(b_head, ((0, 0), (0, n_out_pad - n_out))).astype(jnp.float32)

    C, F = w_eff.shape
    return {
        "w_stem": w_eff.reshape(C, F, 1),   # per-channel (F, 1) slabs
        "b_stem": b_eff.reshape(F, 1),      # (F, 1)
        "w_head": w_head,                   # (F, NO_pad)
        "b_head": b_head,                   # (1, NO_pad)
        "num_classes": w_cls.shape[1],
    }


def _pick_spatial_tile(hw, target=2048):
    """Largest 128-multiple divisor of hw <= target, else the full extent."""
    if hw <= target:
        return hw                            # single tile == full extent
    t = (min(hw, target) // 128) * 128
    while t >= 128:
        if hw % t == 0:
            return t
        t -= 128
    return hw                                # no 128-multiple divisor


def _pick_batch_tile(b, max_bt=8):
    for bt in (8, 4, 2, 1):
        if bt <= min(b, max_bt) and b % bt == 0:
            return bt
    return 1


# ---------------------------------------------------------------------------
# Wrapper
# ---------------------------------------------------------------------------
def batch_predictor(imgs, prepared, *, spatial_tile=None, batch_tile=None):
    """imgs: (B, H, W, 3) images (RGB order if prepared with 'RGB'), already
    at the test resolution. Returns {"scores": (B, NC), "boxes": (B, 4)}."""
    # TODO(synk): ResizeShortestEdge interpolation (aug.get_transform) has no
    # clean Pallas equivalent; inputs are assumed pre-resized.
    # TODO(synk): images could be shipped as uint8 and upcast in-kernel (exact
    # since normalization is folded into the weights) to quarter HBM traffic.
    B, H, W, C = imgs.shape
    HW = H * W

    # HWC -> CHW layout (same as the reference `.transpose(2, 0, 1)`) + f32
    # cast; the spatial axis (multiple of 128) lands on the TPU lane dim.
    x = jnp.transpose(imgs.astype(jnp.float32), (0, 3, 1, 2)).reshape(B, C, HW)

    w_stem, b_stem = prepared["w_stem"], prepared["b_stem"]
    w_head, b_head = prepared["w_head"], prepared["b_head"]
    nc = prepared["num_classes"]
    F = w_stem.shape[1]
    no_pad = w_head.shape[1]

    Bt = batch_tile or _pick_batch_tile(B)
    T = spatial_tile or _pick_spatial_tile(HW)
    assert B % Bt == 0
    assert HW % T == 0 and (T % 128 == 0 or T == HW), (
        "spatial tile must be a multiple of 128 or the full spatial extent")

    # Rough VMEM budget: double-buffered image blocks + feat temporary + slack.
    est = 2 * (Bt * C * T * 4) + 2 * (Bt * F * T * 4) + (4 << 20)
    vmem_limit = int(min(max(est, 16 << 20), 48 << 20))

    def _const(shape):
        nd = len(shape)
        return pl.BlockSpec(shape, lambda ib, sp, _n=nd: (0,) * _n)

    out = pl.pallas_call(
        _make_kernel(C, F, 1.0 / HW),
        out_shape=jax.ShapeDtypeStruct((B, 1, no_pad), jnp.float32),
        grid_spec=pltpu.PrefetchScalarGridSpec(
            num_scalar_prefetch=0,
            grid=(B // Bt, HW // T),
            in_specs=[
                pl.BlockSpec((Bt, C, T), lambda ib, sp: (ib, 0, sp)),  # image
                _const(w_stem.shape),                                  # (C,F,1)
                _const(b_stem.shape),                                  # (F,1)
                _const(w_head.shape),                                  # (F,NOp)
                _const(b_head.shape),                                  # (1,NOp)
            ],
            out_specs=pl.BlockSpec((Bt, 1, no_pad), lambda ib, sp: (ib, 0, 0)),
            scratch_shapes=[pltpu.VMEM((Bt, F, 1), jnp.float32)],
        ),
        compiler_params=pltpu.CompilerParams(
            dimension_semantics=("parallel", "arbitrary"),
            vmem_limit_bytes=vmem_limit),
    )(x, w_stem, b_stem, w_head, b_head)

    return {"scores": out[:, 0, :nc], "boxes": out[:, 0, nc:nc + 4]}


# ---------------------------------------------------------------------------
# Pure-JAX reference (mirrors the PyTorch wrapper semantics on raw params)
# ---------------------------------------------------------------------------
def batch_predictor_ref(imgs, params, input_format="RGB"):
    mean, std, w_stem, b_stem, w_cls, b_cls, w_box, b_box = params
    if input_format == "RGB":
        imgs = imgs[..., ::-1]
    B, H, W, C = imgs.shape
    x = imgs.astype(jnp.float32).reshape(B, H * W, C)
    xn = (x - mean) / std
    feat = jnp.maximum(jnp.einsum("bnc,cf->bnf", xn, w_stem) + b_stem, 0.0)
    pooled = feat.mean(axis=1)
    return {"scores": pooled @ w_cls + b_cls, "boxes": pooled @ w_box + b_box}


def make_params(key, C=3, F=32, NC=8):
    k1, k2, k3, k4 = jax.random.split(key, 4)
    mean = jnp.array([[103.53, 116.28, 123.675]], dtype=jnp.float32)   # BGR
    std = jnp.array([[57.375, 57.12, 58.395]], dtype=jnp.float32)
    w_stem = jax.random.normal(k1, (C, F), jnp.float32) * 0.1
    b_stem = jnp.zeros((1, F), jnp.float32)
    w_cls = jax.random.normal(k2, (F, NC), jnp.float32) * 0.1
    b_cls = jax.random.normal(k3, (1, NC), jnp.float32) * 0.01
    w_box = jax.random.normal(k4, (F, 4), jnp.float32) * 0.1
    b_box = jnp.zeros((1, 4), jnp.float32)
    return (mean, std, w_stem, b_stem, w_cls, b_cls, w_box, b_box)


if __name__ == "__main__":
    key = jax.random.PRNGKey(0)
    k_img, k_par = jax.random.split(key)

    B, H, W, C = 2, 32, 32, 3           # HW = 1024 -> 4 spatial tiles of 256
    F, NC = 32, 8
    imgs = jax.random.randint(k_img, (B, H, W, C), 0, 256).astype(jnp.float32)
    raw_params = make_params(k_par, C=C, F=F, NC=NC)

    prepared = prepare_params(raw_params, input_format="RGB")   # fold once
    out = batch_predictor(imgs, prepared, spatial_tile=256)
    out = jax.tree_util.tree_map(jax.block_until_ready, out)

    ref = batch_predictor_ref(imgs, raw_params, input_format="RGB")
    assert jnp.allclose(out["scores"], ref["scores"], rtol=1e-3, atol=1e-3), \
        "scores mismatch"
    assert jnp.allclose(out["boxes"], ref["boxes"], rtol=1e-3, atol=1e-3), \
        "boxes mismatch"

    print("KERNEL_OK")
</pallas_src>

<mosaic_0001>
module attributes {stable_mosaic.version = 11 : i64} {
  func.func @kernel(%arg0: i32, %arg1: i32, %arg2: memref<2x3x256xf32, #tpu.memory_space<vmem>>, %arg3: memref<3x32x1xf32, #tpu.memory_space<vmem>>, %arg4: memref<32x1xf32, #tpu.memory_space<vmem>>, %arg5: memref<32x128xf32, #tpu.memory_space<vmem>>, %arg6: memref<1x128xf32, #tpu.memory_space<vmem>>, %arg7: memref<2x1x128xf32, #tpu.memory_space<vmem>>, %arg8: memref<2x32x1xf32, #tpu.memory_space<vmem>>) attributes {dimension_semantics = [#tpu.dimension_semantics<parallel>, #tpu.dimension_semantics<arbitrary>], iteration_bounds = array<i64: 1, 4>, scalar_prefetch = 0 : i64, scratch_operands = 1 : i64, tpu.core_type = #tpu.core_type<tc>, window_params = [{transform_indices = @transform_0, window_bounds = array<i64: 2, 3, 256>}, {pipeline_mode = #tpu.pipeline_mode<synchronous>, transform_indices = @transform_1, window_bounds = array<i64: 3, 32, 1>}, {pipeline_mode = #tpu.pipeline_mode<synchronous>, transform_indices = @transform_2, window_bounds = array<i64: 32, 1>}, {pipeline_mode = #tpu.pipeline_mode<synchronous>, transform_indices = @transform_3, window_bounds = array<i64: 32, 128>}, {pipeline_mode = #tpu.pipeline_mode<synchronous>, transform_indices = @transform_4, window_bounds = array<i64: 1, 128>}, {transform_indices = @transform_5, window_bounds = array<i64: 2, 1, 128>}]} {
    %c0_i32 = arith.constant 0 : i32
    %0 = arith.cmpi eq, %arg1, %c0_i32 : i32
    %1 = arith.extui %0 : i1 to i32
    %c0_i32_0 = arith.constant 0 : i32
    %2 = arith.cmpi ne, %1, %c0_i32_0 : i32
    scf.if %2 {
      %cst_16 = arith.constant 0.000000e+00 : f32
      %42 = vector.broadcast %cst_16 : f32 to vector<2x32x1xf32>
      %c0_17 = arith.constant 0 : index
      %c0_18 = arith.constant 0 : index
      %c0_19 = arith.constant 0 : index
      %43 = vector.load %arg8[%c0_17, %c0_18, %c0_19] : memref<2x32x1xf32, #tpu.memory_space<vmem>>, vector<2x32x1xf32>
      tpu.vector_store %arg8[%c0_17, %c0_18, %c0_19], %42 {strides = array<i32>} : memref<2x32x1xf32, #tpu.memory_space<vmem>>, vector<2x32x1xf32>,
    } else {
    }
    %c0 = arith.constant 0 : index
    %c0_1 = arith.constant 0 : index
    %c0_2 = arith.constant 0 : index
    %3 = vector.load %arg2[%c0, %c0_1, %c0_2] : memref<2x3x256xf32, #tpu.memory_space<vmem>>, vector<2x3x256xf32>
    %c0_3 = arith.constant 0 : index
    %c0_4 = arith.constant 0 : index
    %c0_5 = arith.constant 0 : index
    %4 = vector.load %arg3[%c0_3, %c0_4, %c0_5] : memref<3x32x1xf32, #tpu.memory_space<vmem>>, vector<3x32x1xf32>
    %5 = vector.extract_strided_slice %4 {offsets = [0, 0, 0], sizes = [1, 32, 1], strides = [1, 1, 1]} : vector<3x32x1xf32> to vector<1x32x1xf32>
    %6 = vector.shape_cast %5 : vector<1x32x1xf32> to vector<32x1xf32>
    %7 = vector.extract_strided_slice %3 {offsets = [0, 0, 0], sizes = [2, 1, 256], strides = [1, 1, 1]} : vector<2x3x256xf32> to vector<2x1x256xf32>
    %8 = vector.shape_cast %6 : vector<32x1xf32> to vector<1x32x1xf32>
    %9 = vector.broadcast %8 : vector<1x32x1xf32> to vector<2x32x256xf32>
    %10 = vector.broadcast %7 : vector<2x1x256xf32> to vector<2x32x256xf32>
    %11 = arith.mulf %9, %10 : vector<2x32x256xf32>
    %12 = vector.extract_strided_slice %4 {offsets = [1, 0, 0], sizes = [1, 32, 1], strides = [1, 1, 1]} : vector<3x32x1xf32> to vector<1x32x1xf32>
    %13 = vector.shape_cast %12 : vector<1x32x1xf32> to vector<32x1xf32>
    %14 = vector.extract_strided_slice %3 {offsets = [0, 1, 0], sizes = [2, 1, 256], strides = [1, 1, 1]} : vector<2x3x256xf32> to vector<2x1x256xf32>
    %15 = vector.shape_cast %13 : vector<32x1xf32> to vector<1x32x1xf32>
    %16 = vector.broadcast %15 : vector<1x32x1xf32> to vector<2x32x256xf32>
    %17 = vector.broadcast %14 : vector<2x1x256xf32> to vector<2x32x256xf32>
    %18 = arith.mulf %16, %17 : vector<2x32x256xf32>
    %19 = arith.addf %11, %18 : vector<2x32x256xf32>
    %20 = vector.extract_strided_slice %4 {offsets = [2, 0, 0], sizes = [1, 32, 1], strides = [1, 1, 1]} : vector<3x32x1xf32> to vector<1x32x1xf32>
    %21 = vector.shape_cast %20 : vector<1x32x1xf32> to vector<32x1xf32>
    %22 = vector.extract_strided_slice %3 {offsets = [0, 2, 0], sizes = [2, 1, 256], strides = [1, 1, 1]} : vector<2x3x256xf32> to vector<2x1x256xf32>
    %23 = vector.shape_cast %21 : vector<32x1xf32> to vector<1x32x1xf32>
    %24 = vector.broadcast %23 : vector<1x32x1xf32> to vector<2x32x256xf32>
    %25 = vector.broadcast %22 : vector<2x1x256xf32> to vector<2x32x256xf32>
    %26 = arith.mulf %24, %25 : vector<2x32x256xf32>
    %27 = arith.addf %19, %26 : vector<2x32x256xf32>
    %c0_6 = arith.constant 0 : index
    %c0_7 = arith.constant 0 : index
    %28 = vector.load %arg4[%c0_6, %c0_7] : memref<32x1xf32, #tpu.memory_space<vmem>>, vector<32x1xf32>
    %29 = vector.shape_cast %28 : vector<32x1xf32> to vector<1x32x1xf32>
    %30 = vector.broadcast %29 : vector<1x32x1xf32> to vector<2x32x256xf32>
    %31 = arith.addf %27, %30 : vector<2x32x256xf32>
    %cst = arith.constant 0.000000e+00 : f32
    %32 = vector.broadcast %cst : f32 to vector<2x32x256xf32>
    %33 = arith.maximumf %31, %32 : vector<2x32x256xf32>
    %c0_8 = arith.constant 0 : index
    %c0_9 = arith.constant 0 : index
    %c0_10 = arith.constant 0 : index
    %34 = vector.load %arg8[%c0_8, %c0_9, %c0_10] : memref<2x32x1xf32, #tpu.memory_space<vmem>>, vector<2x32x1xf32>
    %cst_11 = arith.constant dense<0.000000e+00> : vector<2x32xf32>
    %35 = vector.multi_reduction <add>, %33, %cst_11 [2] : vector<2x32x256xf32> to vector<2x32xf32>
    %36 = vector.shape_cast %35 : vector<2x32xf32> to vector<2x32x1xf32>
    %37 = arith.addf %34, %36 : vector<2x32x1xf32>
    %c0_12 = arith.constant 0 : index
    %c0_13 = arith.constant 0 : index
    %c0_14 = arith.constant 0 : index
    %38 = vector.load %arg8[%c0_12, %c0_13, %c0_14] : memref<2x32x1xf32, #tpu.memory_space<vmem>>, vector<2x32x1xf32>
    tpu.vector_store %arg8[%c0_12, %c0_13, %c0_14], %37 {strides = array<i32>} : memref<2x32x1xf32, #tpu.memory_space<vmem>>, vector<2x32x1xf32>,
    %c3_i32 = arith.constant 3 : i32
    %39 = arith.cmpi eq, %arg1, %c3_i32 : i32
    %40 = arith.extui %39 : i1 to i32
    %c0_i32_15 = arith.constant 0 : i32
    %41 = arith.cmpi ne, %40, %c0_i32_15 : i32
    scf.if %41 {
      %c0_16 = arith.constant 0 : index
      %c0_17 = arith.constant 0 : index
      %c0_18 = arith.constant 0 : index
      %42 = vector.load %arg8[%c0_16, %c0_17, %c0_18] : memref<2x32x1xf32, #tpu.memory_space<vmem>>, vector<2x32x1xf32>
      %cst_19 = arith.constant 9.765625E-4 : f32
      %43 = vector.broadcast %cst_19 : f32 to vector<2x32x1xf32>
      %44 = arith.mulf %42, %43 : vector<2x32x1xf32>
      %c0_20 = arith.constant 0 : index
      %c0_21 = arith.constant 0 : index
      %45 = vector.load %arg5[%c0_20, %c0_21] : memref<32x128xf32, #tpu.memory_space<vmem>>, vector<32x128xf32>
      %46 = vector.extract_strided_slice %44 {offsets = [0, 0, 0], sizes = [2, 1, 1], strides = [1, 1, 1]} : vector<2x32x1xf32> to vector<2x1x1xf32>
      %47 = vector.extract_strided_slice %45 {offsets = [0, 0], sizes = [1, 128], strides = [1, 1]} : vector<32x128xf32> to vector<1x128xf32>
      %48 = vector.shape_cast %47 : vector<1x128xf32> to vector<1x1x128xf32>
      %49 = vector.broadcast %46 : vector<2x1x1xf32> to vector<2x1x128xf32>
      %50 = vector.broadcast %48 : vector<1x1x128xf32> to vector<2x1x128xf32>
      %51 = arith.mulf %49, %50 : vector<2x1x128xf32>
      %52 = vector.extract_strided_slice %44 {offsets = [0, 1, 0], sizes = [2, 1, 1], strides = [1, 1, 1]} : vector<2x32x1xf32> to vector<2x1x1xf32>
      %53 = vector.extract_strided_slice %45 {offsets = [1, 0], sizes = [1, 128], strides = [1, 1]} : vector<32x128xf32> to vector<1x128xf32>
      %54 = vector.shape_cast %53 : vector<1x128xf32> to vector<1x1x128xf32>
      %55 = vector.broadcast %52 : vector<2x1x1xf32> to vector<2x1x128xf32>
      %56 = vector.broadcast %54 : vector<1x1x128xf32> to vector<2x1x128xf32>
      %57 = arith.mulf %55, %56 : vector<2x1x128xf32>
      %58 = arith.addf %51, %57 : vector<2x1x128xf32>
      %59 = vector.extract_strided_slice %44 {offsets = [0, 2, 0], sizes = [2, 1, 1], strides = [1, 1, 1]} : vector<2x32x1xf32> to vector<2x1x1xf32>
      %60 = vector.extract_strided_slice %45 {offsets = [2, 0], sizes = [1, 128], strides = [1, 1]} : vector<32x128xf32> to vector<1x128xf32>
      %61 = vector.shape_cast %60 : vector<1x128xf32> to vector<1x1x128xf32>
      %62 = vector.broadcast %59 : vector<2x1x1xf32> to vector<2x1x128xf32>
      %63 = vector.broadcast %61 : vector<1x1x128xf32> to vector<2x1x128xf32>
      %64 = arith.mulf %62, %63 : vector<2x1x128xf32>
      %65 = arith.addf %58, %64 : vector<2x1x128xf32>
      %66 = vector.extract_strided_slice %44 {offsets = [0, 3, 0], sizes = [2, 1, 1], strides = [1, 1, 1]} : vector<2x32x1xf32> to vector<2x1x1xf32>
      %67 = vector.extract_strided_slice %45 {offsets = [3, 0], sizes = [1, 128], strides = [1, 1]} : vector<32x128xf32> to vector<1x128xf32>
      %68 = vector.shape_cast %67 : vector<1x128xf32> to vector<1x1x128xf32>
      %69 = vector.broadcast %66 : vector<2x1x1xf32> to vector<2x1x128xf32>
      %70 = vector.broadcast %68 : vector<1x1x128xf32> to vector<2x1x128xf32>
      %71 = arith.mulf %69, %70 : vector<2x1x128xf32>
      %72 = arith.addf %65, %71 : vector<2x1x128xf32>
      %73 = vector.extract_strided_slice %44 {offsets = [0, 4, 0], sizes = [2, 1, 1], strides = [1, 1, 1]} : vector<2x32x1xf32> to vector<2x1x1xf32>
      %74 = vector.extract_strided_slice %45 {offsets = [4, 0], sizes = [1, 128], strides = [1, 1]} : vector<32x128xf32> to vector<1x128xf32>
      %75 = vector.shape_cast %74 : vector<1x128xf32> to vector<1x1x128xf32>
      %76 = vector.broadcast %73 : vector<2x1x1xf32> to vector<2x1x128xf32>
      %77 = vector.broadcast %75 : vector<1x1x128xf32> to vector<2x1x128xf32>
      %78 = arith.mulf %76, %77 : vector<2x1x128xf32>
      %79 = arith.addf %72, %78 : vector<2x1x128xf32>
      %80 = vector.extract_strided_slice %44 {offsets = [0, 5, 0], sizes = [2, 1, 1], strides = [1, 1, 1]} : vector<2x32x1xf32> to vector<2x1x1xf32>
      %81 = vector.extract_strided_slice %45 {offsets = [5, 0], sizes = [1, 128], strides = [1, 1]} : vector<32x128xf32> to vector<1x128xf32>
      %82 = vector.shape_cast %81 : vector<1x128xf32> to vector<1x1x128xf32>
      %83 = vector.broadcast %80 : vector<2x1x1xf32> to vector<2x1x128xf32>
      %84 = vector.broadcast %82 : vector<1x1x128xf32> to vector<2x1x128xf32>
      %85 = arith.mulf %83, %84 : vector<2x1x128xf32>
      %86 = arith.addf %79, %85 : vector<2x1x128xf32>
      %87 = vector.extract_strided_slice %44 {offsets = [0, 6, 0], sizes = [2, 1, 1], strides = [1, 1, 1]} : vector<2x32x1xf32> to vector<2x1x1xf32>
      %88 = vector.extract_strided_slice %45 {offsets = [6, 0], sizes = [1, 128], strides = [1, 1]} : vector<32x128xf32> to vector<1x128xf32>
      %89 = vector.shape_cast %88 : vector<1x128xf32> to vector<1x1x128xf32>
      %90 = vector.broadcast %87 : vector<2x1x1xf32> to vector<2x1x128xf32>
      %91 = vector.broadcast %89 : vector<1x1x128xf32> to vector<2x1x128xf32>
      %92 = arith.mulf %90, %91 : vector<2x1x128xf32>
      %93 = arith.addf %86, %92 : vector<2x1x128xf32>
      %94 = vector.extract_strided_slice %44 {offsets = [0, 7, 0], sizes = [2, 1, 1], strides = [1, 1, 1]} : vector<2x32x1xf32> to vector<2x1x1xf32>
      %95 = vector.extract_strided_slice %45 {offsets = [7, 0], sizes = [1, 128], strides = [1, 1]} : vector<32x128xf32> to vector<1x128xf32>
      %96 = vector.shape_cast %95 : vector<1x128xf32> to vector<1x1x128xf32>
      %97 = vector.broadcast %94 : vector<2x1x1xf32> to vector<2x1x128xf32>
      %98 = vector.broadcast %96 : vector<1x1x128xf32> to vector<2x1x128xf32>
      %99 = arith.mulf %97, %98 : vector<2x1x128xf32>
      %100 = arith.addf %93, %99 : vector<2x1x128xf32>
      %101 = vector.extract_strided_slice %44 {offsets = [0, 8, 0], sizes = [2, 1, 1], strides = [1, 1, 1]} : vector<2x32x1xf32> to vector<2x1x1xf32>
      %102 = vector.extract_strided_slice %45 {offsets = [8, 0], sizes = [1, 128], strides = [1, 1]} : vector<32x128xf32> to vector<1x128xf32>
      %103 = vector.shape_cast %102 : vector<1x128xf32> to vector<1x1x128xf32>
      %104 = vector.broadcast %101 : vector<2x1x1xf32> to vector<2x1x128xf32>
      %105 = vector.broadcast %103 : vector<1x1x128xf32> to vector<2x1x128xf32>
      %106 = arith.mulf %104, %105 : vector<2x1x128xf32>
      %107 = arith.addf %100, %106 : vector<2x1x128xf32>
      %108 = vector.extract_strided_slice %44 {offsets = [0, 9, 0], sizes = [2, 1, 1], strides = [1, 1, 1]} : vector<2x32x1xf32> to vector<2x1x1xf32>
      %109 = vector.extract_strided_slice %45 {offsets = [9, 0], sizes = [1, 128], strides = [1, 1]} : vector<32x128xf32> to vector<1x128xf32>
      %110 = vector.shape_cast %109 : vector<1x128xf32> to vector<1x1x128xf32>
      %111 = vector.broadcast %108 : vector<2x1x1xf32> to vector<2x1x128xf32>
      %112 = vector.broadcast %110 : vector<1x1x128xf32> to vector<2x1x128xf32>
      %113 = arith.mulf %111, %112 : vector<2x1x128xf32>
      %114 = arith.addf %107, %113 : vector<2x1x128xf32>
      %115 = vector.extract_strided_slice %44 {offsets = [0, 10, 0], sizes = [2, 1, 1], strides = [1, 1, 1]} : vector<2x32x1xf32> to vector<2x1x1xf32>
      %116 = vector.extract_strided_slice %45 {offsets = [10, 0], sizes = [1, 128], strides = [1, 1]} : vector<32x128xf32> to vector<1x128xf32>
      %117 = vector.shape_cast %116 : vector<1x128xf32> to vector<1x1x128xf32>
      %118 = vector.broadcast %115 : vector<2x1x1xf32> to vector<2x1x128xf32>
      %119 = vector.broadcast %117 : vector<1x1x128xf32> to vector<2x1x128xf32>
      %120 = arith.mulf %118, %119 : vector<2x1x128xf32>
      %121 = arith.addf %114, %120 : vector<2x1x128xf32>
      %122 = vector.extract_strided_slice %44 {offsets = [0, 11, 0], sizes = [2, 1, 1], strides = [1, 1, 1]} : vector<2x32x1xf32> to vector<2x1x1xf32>
      %123 = vector.extract_strided_slice %45 {offsets = [11, 0], sizes = [1, 128], strides = [1, 1]} : vector<32x128xf32> to vector<1x128xf32>
      %124 = vector.shape_cast %123 : vector<1x128xf32> to vector<1x1x128xf32>
      %125 = vector.broadcast %122 : vector<2x1x1xf32> to vector<2x1x128xf32>
      %126 = vector.broadcast %124 : vector<1x1x128xf32> to vector<2x1x128xf32>
      %127 = arith.mulf %125, %126 : vector<2x1x128xf32>
      %128 = arith.addf %121, %127 : vector<2x1x128xf32>
      %129 = vector.extract_strided_slice %44 {offsets = [0, 12, 0], sizes = [2, 1, 1], strides = [1, 1, 1]} : vector<2x32x1xf32> to vector<2x1x1xf32>
      %130 = vector.extract_strided_slice %45 {offsets = [12, 0], sizes = [1, 128], strides = [1, 1]} : vector<32x128xf32> to vector<1x128xf32>
      %131 = vector.shape_cast %130 : vector<1x128xf32> to vector<1x1x128xf32>
      %132 = vector.broadcast %129 : vector<2x1x1xf32> to vector<2x1x128xf32>
      %133 = vector.broadcast %131 : vector<1x1x128xf32> to vector<2x1x128xf32>
      %134 = arith.mulf %132, %133 : vector<2x1x128xf32>
      %135 = arith.addf %128, %134 : vector<2x1x128xf32>
      %136 = vector.extract_strided_slice %44 {offsets = [0, 13, 0], sizes = [2, 1, 1], strides = [1, 1, 1]} : vector<2x32x1xf32> to vector<2x1x1xf32>
      %137 = vector.extract_strided_slice %45 {offsets = [13, 0], sizes = [1, 128], strides = [1, 1]} : vector<32x128xf32> to vector<1x128xf32>
      %138 = vector.shape_cast %137 : vector<1x128xf32> to vector<1x1x128xf32>
      %139 = vector.broadcast %136 : vector<2x1x1xf32> to vector<2x1x128xf32>
      %140 = vector.broadcast %138 : vector<1x1x128xf32> to vector<2x1x128xf32>
      %141 = arith.mulf %139, %140 : vector<2x1x128xf32>
      %142 = arith.addf %135, %141 : vector<2x1x128xf32>
      %143 = vector.extract_strided_slice %44 {offsets = [0, 14, 0], sizes = [2, 1, 1], strides = [1, 1, 1]} : vector<2x32x1xf32> to vector<2x1x1xf32>
      %144 = vector.extract_strided_slice %45 {offsets = [14, 0], sizes = [1, 128], strides = [1, 1]} : vector<32x128xf32> to vector<1x128xf32>
      %145 = vector.shape_cast %144 : vector<1x128xf32> to vector<1x1x128xf32>
      %146 = vector.broadcast %143 : vector<2x1x1xf32> to vector<2x1x128xf32>
      %147 = vector.broadcast %145 : vector<1x1x128xf32> to vector<2x1x128xf32>
      %148 = arith.mulf %146, %147 : vector<2x1x128xf32>
      %149 = arith.addf %142, %148 : vector<2x1x128xf32>
      %150 = vector.extract_strided_slice %44 {offsets = [0, 15, 0], sizes = [2, 1, 1], strides = [1, 1, 1]} : vector<2x32x1xf32> to vector<2x1x1xf32>
      %151 = vector.extract_strided_slice %45 {offsets = [15, 0], sizes = [1, 128], strides = [1, 1]} : vector<32x128xf32> to vector<1x128xf32>
      %152 = vector.shape_cast %151 : vector<1x128xf32> to vector<1x1x128xf32>
      %153 = vector.broadcast %150 : vector<2x1x1xf32> to vector<2x1x128xf32>
      %154 = vector.broadcast %152 : vector<1x1x128xf32> to vector<2x1x128xf32>
      %155 = arith.mulf %153, %154 : vector<2x1x128xf32>
      %156 = arith.addf %149, %155 : vector<2x1x128xf32>
      %157 = vector.extract_strided_slice %44 {offsets = [0, 16, 0], sizes = [2, 1, 1], strides = [1, 1, 1]} : vector<2x32x1xf32> to vector<2x1x1xf32>
      %158 = vector.extract_strided_slice %45 {offsets = [16, 0], sizes = [1, 128], strides = [1, 1]} : vector<32x128xf32> to vector<1x128xf32>
      %159 = vector.shape_cast %158 : vector<1x128xf32> to vector<1x1x128xf32>
      %160 = vector.broadcast %157 : vector<2x1x1xf32> to vector<2x1x128xf32>
      %161 = vector.broadcast %159 : vector<1x1x128xf32> to vector<2x1x128xf32>
      %162 = arith.mulf %160, %161 : vector<2x1x128xf32>
      %163 = arith.addf %156, %162 : vector<2x1x128xf32>
      %164 = vector.extract_strided_slice %44 {offsets = [0, 17, 0], sizes = [2, 1, 1], strides = [1, 1, 1]} : vector<2x32x1xf32> to vector<2x1x1xf32>
      %165 = vector.extract_strided_slice %45 {offsets = [17, 0], sizes = [1, 128], strides = [1, 1]} : vector<32x128xf32> to vector<1x128xf32>
      %166 = vector.shape_cast %165 : vector<1x128xf32> to vector<1x1x128xf32>
      %167 = vector.broadcast %164 : vector<2x1x1xf32> to vector<2x1x128xf32>
      %168 = vector.broadcast %166 : vector<1x1x128xf32> to vector<2x1x128xf32>
      %169 = arith.mulf %167, %168 : vector<2x1x128xf32>
      %170 = arith.addf %163, %169 : vector<2x1x128xf32>
      %171 = vector.extract_strided_slice %44 {offsets = [0, 18, 0], sizes = [2, 1, 1], strides = [1, 1, 1]} : vector<2x32x1xf32> to vector<2x1x1xf32>
      %172 = vector.extract_strided_slice %45 {offsets = [18, 0], sizes = [1, 128], strides = [1, 1]} : vector<32x128xf32> to vector<1x128xf32>
      %173 = vector.shape_cast %172 : vector<1x128xf32> to vector<1x1x128xf32>
      %174 = vector.broadcast %171 : vector<2x1x1xf32> to vector<2x1x128xf32>
      %175 = vector.broadcast %173 : vector<1x1x128xf32> to vector<2x1x128xf32>
      %176 = arith.mulf %174, %175 : vector<2x1x128xf32>
      %177 = arith.addf %170, %176 : vector<2x1x128xf32>
      %178 = vector.extract_strided_slice %44 {offsets = [0, 19, 0], sizes = [2, 1, 1], strides = [1, 1, 1]} : vector<2x32x1xf32> to vector<2x1x1xf32>
      %179 = vector.extract_strided_slice %45 {offsets = [19, 0], sizes = [1, 128], strides = [1, 1]} : vector<32x128xf32> to vector<1x128xf32>
      %180 = vector.shape_cast %179 : vector<1x128xf32> to vector<1x1x128xf32>
      %181 = vector.broadcast %178 : vector<2x1x1xf32> to vector<2x1x128xf32>
      %182 = vector.broadcast %180 : vector<1x1x128xf32> to vector<2x1x128xf32>
      %183 = arith.mulf %181, %182 : vector<2x1x128xf32>
      %184 = arith.addf %177, %183 : vector<2x1x128xf32>
      %185 = vector.extract_strided_slice %44 {offsets = [0, 20, 0], sizes = [2, 1, 1], strides = [1, 1, 1]} : vector<2x32x1xf32> to vector<2x1x1xf32>
      %186 = vector.extract_strided_slice %45 {offsets = [20, 0], sizes = [1, 128], strides = [1, 1]} : vector<32x128xf32> to vector<1x128xf32>
      %187 = vector.shape_cast %186 : vector<1x128xf32> to vector<1x1x128xf32>
      %188 = vector.broadcast %185 : vector<2x1x1xf32> to vector<2x1x128xf32>
      %189 = vector.broadcast %187 : vector<1x1x128xf32> to vector<2x1x128xf32>
      %190 = arith.mulf %188, %189 : vector<2x1x128xf32>
      %191 = arith.addf %184, %190 : vector<2x1x128xf32>
      %192 = vector.extract_strided_slice %44 {offsets = [0, 21, 0], sizes = [2, 1, 1], strides = [1, 1, 1]} : vector<2x32x1xf32> to vector<2x1x1xf32>
      %193 = vector.extract_strided_slice %45 {offsets = [21, 0], sizes = [1, 128], strides = [1, 1]} : vector<32x128xf32> to vector<1x128xf32>
      %194 = vector.shape_cast %193 : vector<1x128xf32> to vector<1x1x128xf32>
      %195 = vector.broadcast %192 : vector<2x1x1xf32> to vector<2x1x128xf32>
      %196 = vector.broadcast %194 : vector<1x1x128xf32> to vector<2x1x128xf32>
      %197 = arith.mulf %195, %196 : vector<2x1x128xf32>
      %198 = arith.addf %191, %197 : vector<2x1x128xf32>
      %199 = vector.extract_strided_slice %44 {offsets = [0, 22, 0], sizes = [2, 1, 1], strides = [1, 1, 1]} : vector<2x32x1xf32> to vector<2x1x1xf32>
      %200 = vector.extract_strided_slice %45 {offsets = [22, 0], sizes = [1, 128], strides = [1, 1]} : vector<32x128xf32> to vector<1x128xf32>
      %201 = vector.shape_cast %200 : vector<1x128xf32> to vector<1x1x128xf32>
      %202 = vector.broadcast %199 : vector<2x1x1xf32> to vector<2x1x128xf32>
      %203 = vector.broadcast %201 : vector<1x1x128xf32> to vector<2x1x128xf32>
      %204 = arith.mulf %202, %203 : vector<2x1x128xf32>
      %205 = arith.addf %198, %204 : vector<2x1x128xf32>
      %206 = vector.extract_strided_slice %44 {offsets = [0, 23, 0], sizes = [2, 1, 1], strides = [1, 1, 1]} : vector<2x32x1xf32> to vector<2x1x1xf32>
      %207 = vector.extract_strided_slice %45 {offsets = [23, 0], sizes = [1, 128], strides = [1, 1]} : vector<32x128xf32> to vector<1x128xf32>
      %208 = vector.shape_cast %207 : vector<1x128xf32> to vector<1x1x128xf32>
      %209 = vector.broadcast %206 : vector<2x1x1xf32> to vector<2x1x128xf32>
      %210 = vector.broadcast %208 : vector<1x1x128xf32> to vector<2x1x128xf32>
      %211 = arith.mulf %209, %210 : vector<2x1x128xf32>
      %212 = arith.addf %205, %211 : vector<2x1x128xf32>
      %213 = vector.extract_strided_slice %44 {offsets = [0, 24, 0], sizes = [2, 1, 1], strides = [1, 1, 1]} : vector<2x32x1xf32> to vector<2x1x1xf32>
      %214 = vector.extract_strided_slice %45 {offsets = [24, 0], sizes = [1, 128], strides = [1, 1]} : vector<32x128xf32> to vector<1x128xf32>
      %215 = vector.shape_cast %214 : vector<1x128xf32> to vector<1x1x128xf32>
      %216 = vector.broadcast %213 : vector<2x1x1xf32> to vector<2x1x128xf32>
      %217 = vector.broadcast %215 : vector<1x1x128xf32> to vector<2x1x128xf32>
      %218 = arith.mulf %216, %217 : vector<2x1x128xf32>
      %219 = arith.addf %212, %218 : vector<2x1x128xf32>
      %220 = vector.extract_strided_slice %44 {offsets = [0, 25, 0], sizes = [2, 1, 1], strides = [1, 1, 1]} : vector<2x32x1xf32> to vector<2x1x1xf32>
      %221 = vector.extract_strided_slice %45 {offsets = [25, 0], sizes = [1, 128], strides = [1, 1]} : vector<32x128xf32> to vector<1x128xf32>
      %222 = vector.shape_cast %221 : vector<1x128xf32> to vector<1x1x128xf32>
      %223 = vector.broadcast %220 : vector<2x1x1xf32> to vector<2x1x128xf32>
      %224 = vector.broadcast %222 : vector<1x1x128xf32> to vector<2x1x128xf32>
      %225 = arith.mulf %223, %224 : vector<2x1x128xf32>
      %226 = arith.addf %219, %225 : vector<2x1x128xf32>
      %227 = vector.extract_strided_slice %44 {offsets = [0, 26, 0], sizes = [2, 1, 1], strides = [1, 1, 1]} : vector<2x32x1xf32> to vector<2x1x1xf32>
      %228 = vector.extract_strided_slice %45 {offsets = [26, 0], sizes = [1, 128], strides = [1, 1]} : vector<32x128xf32> to vector<1x128xf32>
      %229 = vector.shape_cast %228 : vector<1x128xf32> to vector<1x1x128xf32>
      %230 = vector.broadcast %227 : vector<2x1x1xf32> to vector<2x1x128xf32>
      %231 = vector.broadcast %229 : vector<1x1x128xf32> to vector<2x1x128xf32>
      %232 = arith.mulf %230, %231 : vector<2x1x128xf32>
      %233 = arith.addf %226, %232 : vector<2x1x128xf32>
      %234 = vector.extract_strided_slice %44 {offsets = [0, 27, 0], sizes = [2, 1, 1], strides = [1, 1, 1]} : vector<2x32x1xf32> to vector<2x1x1xf32>
      %235 = vector.extract_strided_slice %45 {offsets = [27, 0], sizes = [1, 128], strides = [1, 1]} : vector<32x128xf32> to vector<1x128xf32>
      %236 = vector.shape_cast %235 : vector<1x128xf32> to vector<1x1x128xf32>
      %237 = vector.broadcast %234 : vector<2x1x1xf32> to vector<2x1x128xf32>
      %238 = vector.broadcast %236 : vector<1x1x128xf32> to vector<2x1x128xf32>
      %239 = arith.mulf %237, %238 : vector<2x1x128xf32>
      %240 = arith.addf %233, %239 : vector<2x1x128xf32>
      %241 = vector.extract_strided_slice %44 {offsets = [0, 28, 0], sizes = [2, 1, 1], strides = [1, 1, 1]} : vector<2x32x1xf32> to vector<2x1x1xf32>
      %242 = vector.extract_strided_slice %45 {offsets = [28, 0], sizes = [1, 128], strides = [1, 1]} : vector<32x128xf32> to vector<1x128xf32>
      %243 = vector.shape_cast %242 : vector<1x128xf32> to vector<1x1x128xf32>
      %244 = vector.broadcast %241 : vector<2x1x1xf32> to vector<2x1x128xf32>
      %245 = vector.broadcast %243 : vector<1x1x128xf32> to vector<2x1x128xf32>
      %246 = arith.mulf %244, %245 : vector<2x1x128xf32>
      %247 = arith.addf %240, %246 : vector<2x1x128xf32>
      %248 = vector.extract_strided_slice %44 {offsets = [0, 29, 0], sizes = [2, 1, 1], strides = [1, 1, 1]} : vector<2x32x1xf32> to vector<2x1x1xf32>
      %249 = vector.extract_strided_slice %45 {offsets = [29, 0], sizes = [1, 128], strides = [1, 1]} : vector<32x128xf32> to vector<1x128xf32>
      %250 = vector.shape_cast %249 : vector<1x128xf32> to vector<1x1x128xf32>
      %251 = vector.broadcast %248 : vector<2x1x1xf32> to vector<2x1x128xf32>
      %252 = vector.broadcast %250 : vector<1x1x128xf32> to vector<2x1x128xf32>
      %253 = arith.mulf %251, %252 : vector<2x1x128xf32>
      %254 = arith.addf %247, %253 : vector<2x1x128xf32>
      %255 = vector.extract_strided_slice %44 {offsets = [0, 30, 0], sizes = [2, 1, 1], strides = [1, 1, 1]} : vector<2x32x1xf32> to vector<2x1x1xf32>
      %256 = vector.extract_strided_slice %45 {offsets = [30, 0], sizes = [1, 128], strides = [1, 1]} : vector<32x128xf32> to vector<1x128xf32>
      %257 = vector.shape_cast %256 : vector<1x128xf32> to vector<1x1x128xf32>
      %258 = vector.broadcast %255 : vector<2x1x1xf32> to vector<2x1x128xf32>
      %259 = vector.broadcast %257 : vector<1x1x128xf32> to vector<2x1x128xf32>
      %260 = arith.mulf %258, %259 : vector<2x1x128xf32>
      %261 = arith.addf %254, %260 : vector<2x1x128xf32>
      %262 = vector.extract_strided_slice %44 {offsets = [0, 31, 0], sizes = [2, 1, 1], strides = [1, 1, 1]} : vector<2x32x1xf32> to vector<2x1x1xf32>
      %263 = vector.extract_strided_slice %45 {offsets = [31, 0], sizes = [1, 128], strides = [1, 1]} : vector<32x128xf32> to vector<1x128xf32>
      %264 = vector.shape_cast %263 : vector<1x128xf32> to vector<1x1x128xf32>
      %265 = vector.broadcast %262 : vector<2x1x1xf32> to vector<2x1x128xf32>
      %266 = vector.broadcast %264 : vector<1x1x128xf32> to vector<2x1x128xf32>
      %267 = arith.mulf %265, %266 : vector<2x1x128xf32>
      %268 = arith.addf %261, %267 : vector<2x1x128xf32>
      %c0_22 = arith.constant 0 : index
      %c0_23 = arith.constant 0 : index
      %269 = vector.load %arg6[%c0_22, %c0_23] : memref<1x128xf32, #tpu.memory_space<vmem>>, vector<1x128xf32>
      %270 = vector.shape_cast %269 : vector<1x128xf32> to vector<1x1x128xf32>
      %271 = vector.broadcast %270 : vector<1x1x128xf32> to vector<2x1x128xf32>
      %272 = arith.addf %268, %271 : vector<2x1x128xf32>
      %c0_24 = arith.constant 0 : index
      %c0_25 = arith.constant 0 : index
      %c0_26 = arith.constant 0 : index
      %273 = vector.load %arg7[%c0_24, %c0_25, %c0_26] : memref<2x1x128xf32, #tpu.memory_space<vmem>>, vector<2x1x128xf32>
      tpu.vector_store %arg7[%c0_24, %c0_25, %c0_26], %272 {strides = array<i32>} : memref<2x1x128xf32, #tpu.memory_space<vmem>>, vector<2x1x128xf32>,
    } else {
    }
    return
  }
  func.func @transform_0(%arg0: i32, %arg1: i32) -> (i32, i32, i32) {
    %c0_i32 = arith.constant 0 : i32
    %c0_i32_0 = arith.constant 0 : i32
    return %arg0, %c0_i32, %arg1 : i32, i32, i32
  }
  func.func @transform_1(%arg0: i32, %arg1: i32) -> (i32, i32, i32) {
    %c0_i32 = arith.constant 0 : i32
    %c0_i32_0 = arith.constant 0 : i32
    %c0_i32_1 = arith.constant 0 : i32
    %c0_i32_2 = arith.constant 0 : i32
    return %c0_i32, %c0_i32_0, %c0_i32_1 : i32, i32, i32
  }
  func.func @transform_2(%arg0: i32, %arg1: i32) -> (i32, i32) {
    %c0_i32 = arith.constant 0 : i32
    %c0_i32_0 = arith.constant 0 : i32
    %c0_i32_1 = arith.constant 0 : i32
    return %c0_i32, %c0_i32_0 : i32, i32
  }
  func.func @transform_3(%arg0: i32, %arg1: i32) -> (i32, i32) {
    %c0_i32 = arith.constant 0 : i32
    %c0_i32_0 = arith.constant 0 : i32
    %c0_i32_1 = arith.constant 0 : i32
    return %c0_i32, %c0_i32_0 : i32, i32
  }
  func.func @transform_4(%arg0: i32, %arg1: i32) -> (i32, i32) {
    %c0_i32 = arith.constant 0 : i32
    %c0_i32_0 = arith.constant 0 : i32
    %c0_i32_1 = arith.constant 0 : i32
    return %c0_i32, %c0_i32_0 : i32, i32
  }
  func.func @transform_5(%arg0: i32, %arg1: i32) -> (i32, i32, i32) {
    %c0_i32 = arith.constant 0 : i32
    %c0_i32_0 = arith.constant 0 : i32
    %c0_i32_1 = arith.constant 0 : i32
    return %arg0, %c0_i32, %c0_i32_0 : i32, i32, i32
  }
}

</mosaic_0001>

<llo_original>
// kernel: tpu_custom_call.1
$region0: #{tpu_custom_call.1}
  #allocation0 [shape = 'u32[]', space=smem, size = 0x4, offset = 0x4, fixed_abs, tag = 'smem constant byte address 0x4 - core index']
  #allocation1 [shape = 'u32[144,128]{1,0:T(1,128)}', space=vmem, size = 0x12000, scoped, tag = 'internal scratch']
  #allocation2 [shape = 'f32[2,32,1]{2,1,0:T(8,128)}', space=vmem, size = 0x8000, scoped, tag = 'scratch operand']
  %s0 = inlined_call_operand.vmem [shape: f32[2,3,1024], index: 0, kind: input, shape index: {}]
  %s1 = inlined_call_operand.vmem [shape: f32[3,32,1], index: 1, kind: input, shape index: {}]
  %s2 = inlined_call_operand.vmem [shape: f32[32,1], index: 2, kind: input, shape index: {}]
  %s3 = inlined_call_operand.vmem [shape: f32[32,128], index: 3, kind: input, shape index: {}]
  %s4 = inlined_call_operand.vmem [shape: f32[1,128], index: 4, kind: input, shape index: {}]
  %s5 = inlined_call_operand.hbm [shape: f32[2,1,128], index: 5, kind: output, shape index: {}]
  %s6 = sld [smem:[#allocation0]]
  $region99: #{tpu_custom_call.1} parent=0
    _
  %s8 = ssub.s32 1, %s6
  %s9 = scalar_select 0, %s8, %s6
  $region1: #{tpu_custom_call.1} parent=0
    #allocation3 [shape = 'u8[16384]{0}', space=vmem, size = 0x4000, scoped, tag = 'input window, operand 0']
    #allocation4 [shape = 'u8[1024]{0}', space=vmem, size = 0x400, scoped, tag = 'output window, operand 0, single buffered']
    #allocation5 [shape = 's32[2]{0}', space=sflag, size = 0x8, scoped, tag = 'scoped memory for tpu_custom_call.1']
    %10 = vsyncpa [#allocation5], 0
    loop: start=0, step=1, limit=6
    $region2: #{tpu_custom_call.1} parent=1 // loop_pre_header
      _
    $region3: #{tpu_custom_call.1} parent=1 // loop_header
      %s12 = sphi 0, %s16
      %p13 = scmp.ge.s32.totalorder %s12, 6
      %s19 = sphi 0, %s31
      %s20 = sphi 0, %s27
      %s21 = sphi 0, %s19
      %s22 = sphi 0, %s20
      %s23 = sphi 0, %s21
      %s24 = sphi 0, %s22
      %s36 = sphi 0, %s38
      %s39 = sphi 0, %s36
      %s40 = sphi 0, %s39
      %s56 = sphi 0, %s40
      %s60 = sphi 0, %s60
      %s62 = sphi 0, %s60
      %s63 = sphi 0, %s62
      %s77 = sphi 0, %s63
      %s81 = sphi 0, %s81
      %s83 = sphi 0, %s81
      %s84 = sphi 0, %s83
      %s98 = sphi 0, %s84
      %s102 = sphi 0, %s102
      %s104 = sphi 0, %s102
      %s105 = sphi 0, %s104
      %s119 = sphi 0, %s105
      %s123 = sphi 0, %s123
      %s125 = sphi 0, %s123
      %s126 = sphi 0, %s125
      %s140 = sphi 0, %s126
      %s146 = sphi 0, %s148
      %s149 = sphi 0, %s146
      %s150 = sphi 0, %s149
      %s166 = sphi 0, %s150
    $region4: #{tpu_custom_call.1} parent=1 // loop_header_branch
      %15 = sbr.rel (%p13) target = $region8
    $region5: #{tpu_custom_call.1} parent=1 // loop_body
      %s17 = ssub.s32 %s12, 1
      %s18 = ssub.s32 %s12, 2
      %s25 = sadd.s32 1, %s20
      %p26 = scmp.ge.s32.totalorder %s25, 4
      %s27 = scalar_select %p26, 0, %s25
      %s28 = sadd.s32 1, %s19
      %s29 = scalar_select %p26, %s28, %s19
      %p30 = scmp.ge.s32.totalorder %s29, 1
      %s31 = scalar_select %p30, 0, %s29
      %s32 = ssub.s32 %s19, %s31
      %s33 = ssub.s32 %s20, %s27
      %s34 = sor.u32 %s32, %s33
      %p35 = scmp.eq.s32.totalorder %s34, 0
      %s37 = sadd.s32 %s36, 1
      %s38 = scalar_select %p35, %s36, %s37
      %p41 = pneg %p35
      %p42 = scmp.eq.s32.totalorder %s12, 3
      %p43 = por %p41, %p42
      %p44 = scmp.ne.s32.totalorder %s36, %s39
      %p45 = scmp.eq.s32.totalorder %s12, 0
      %p46 = por %p44, %p45
      %p47 = scmp.ne.s32.totalorder %s36, %s39
      %p48 = scmp.eq.s32.totalorder %s17, 3
      %p49 = por %p47, %p48
      %p50 = scmp.ne.s32.totalorder %s39, %s40
      %p51 = scmp.eq.s32.totalorder %s17, 0
      %p52 = por %p50, %p51
      %p53 = scmp.ne.s32.totalorder %s39, %s40
      %p54 = scmp.eq.s32.totalorder %s18, 3
      %p55 = por %p53, %p54
      %p57 = scmp.ne.s32.totalorder %s40, %s56
      %p58 = scmp.eq.s32.totalorder %s18, 0
      %p59 = por %p57, %p58
      %s61 = sadd.s32 %s60, 1
      %p64 = scmp.eq.s32.totalorder %s12, 3
      %p65 = scmp.ne.s32.totalorder %s60, %s62
      %p66 = scmp.eq.s32.totalorder %s12, 0
      %p67 = por %p65, %p66
      %p68 = scmp.ne.s32.totalorder %s60, %s62
      %p69 = scmp.eq.s32.totalorder %s17, 3
      %p70 = por %p68, %p69
      %p71 = scmp.ne.s32.totalorder %s62, %s63
      %p72 = scmp.eq.s32.totalorder %s17, 0
      %p73 = por %p71, %p72
      %p74 = scmp.ne.s32.totalorder %s62, %s63
      %p75 = scmp.eq.s32.totalorder %s18, 3
      %p76 = por %p74, %p75
      %p78 = scmp.ne.s32.totalorder %s63, %s77
      %p79 = scmp.eq.s32.totalorder %s18, 0
      %p80 = por %p78, %p79
      %s82 = sadd.s32 %s81, 1
      %p85 = scmp.eq.s32.totalorder %s12, 3
      %p86 = scmp.ne.s32.totalorder %s81, %s83
      %p87 = scmp.eq.s32.totalorder %s12, 0
      %p88 = por %p86, %p87
      %p89 = scmp.ne.s32.totalorder %s81, %s83
      %p90 = scmp.eq.s32.totalorder %s17, 3
      %p91 = por %p89, %p90
      %p92 = scmp.ne.s32.totalorder %s83, %s84
      %p93 = scmp.eq.s32.totalorder %s17, 0
      %p94 = por %p92, %p93
      %p95 = scmp.ne.s32.totalorder %s83, %s84
      %p96 = scmp.eq.s32.totalorder %s18, 3
      %p97 = por %p95, %p96
      %p99 = scmp.ne.s32.totalorder %s84, %s98
      %p100 = scmp.eq.s32.totalorder %s18, 0
      %p101 = por %p99, %p100
      %s103 = sadd.s32 %s102, 1
      %p106 = scmp.eq.s32.totalorder %s12, 3
      %p107 = scmp.ne.s32.totalorder %s102, %s104
      %p108 = scmp.eq.s32.totalorder %s12, 0
      %p109 = por %p107, %p108
      %p110 = scmp.ne.s32.totalorder %s102, %s104
      %p111 = scmp.eq.s32.totalorder %s17, 3
      %p112 = por %p110, %p111
      %p113 = scmp.ne.s32.totalorder %s104, %s105
      %p114 = scmp.eq.s32.totalorder %s17, 0
      %p115 = por %p113, %p114
      %p116 = scmp.ne.s32.totalorder %s104, %s105
      %p117 = scmp.eq.s32.totalorder %s18, 3
      %p118 = por %p116, %p117
      %p120 = scmp.ne.s32.totalorder %s105, %s119
      %p121 = scmp.eq.s32.totalorder %s18, 0
      %p122 = por %p120, %p121
      %s124 = sadd.s32 %s123, 1
      %p127 = scmp.eq.s32.totalorder %s12, 3
      %p128 = scmp.ne.s32.totalorder %s123, %s125
      %p129 = scmp.eq.s32.totalorder %s12, 0
      %p130 = por %p128, %p129
      %p131 = scmp.ne.s32.totalorder %s123, %s125
      %p132 = scmp.eq.s32.totalorder %s17, 3
      %p133 = por %p131, %p132
      %p134 = scmp.ne.s32.totalorder %s125, %s126
      %p135 = scmp.eq.s32.totalorder %s17, 0
      %p136 = por %p134, %p135
      %p137 = scmp.ne.s32.totalorder %s125, %s126
      %p138 = scmp.eq.s32.totalorder %s18, 3
      %p139 = por %p137, %p138
      %p141 = scmp.ne.s32.totalorder %s126, %s140
      %p142 = scmp.eq.s32.totalorder %s18, 0
      %p143 = por %p141, %p142
      %s144 = ssub.s32 %s19, %s31
      %p145 = scmp.eq.s32.totalorder %s144, 0
      %s147 = sadd.s32 %s146, 1
      %s148 = scalar_select %p145, %s146, %s147
      %p151 = pneg %p145
      %p152 = scmp.eq.s32.totalorder %s12, 3
      %p153 = por %p151, %p152
      %p154 = scmp.ne.s32.totalorder %s146, %s149
      %p155 = scmp.eq.s32.totalorder %s12, 0
      %p156 = por %p154, %p155
      %p157 = scmp.ne.s32.totalorder %s146, %s149
      %p158 = scmp.eq.s32.totalorder %s17, 3
      %p159 = por %p157, %p158
      %p160 = scmp.ne.s32.totalorder %s149, %s150
      %p161 = scmp.eq.s32.totalorder %s17, 0
      %p162 = por %p160, %p161
      %p163 = scmp.ne.s32.totalorder %s149, %s150
      %p164 = scmp.eq.s32.totalorder %s18, 3
      %p165 = por %p163, %p164
      %p167 = scmp.ne.s32.totalorder %s150, %s166
      %p168 = scmp.eq.s32.totalorder %s18, 0
      %p169 = por %p167, %p168
      %p170 = scmp.le.s32.totalorder 1, %s12
      %p171 = scmp.lt.s32.totalorder %s12, 5
      %p172 = pnand %p170, %p171
      %p173 = pneg %p172
      // Predicated region
      $region9: #{tpu_custom_call.1} parent=5 // pred_check
        _
      $region10: #{tpu_custom_call.1} parent=5 // pred_check_branch
        %175 = sbr.rel (%p172) target = $region12
      $region11: #{tpu_custom_call.1} parent=5 // pred_region
        %s176 = ssub.s32 %s12, 1
        // Predicated region
        $region13: #{tpu_custom_call.1} parent=11 // pred_check
          %p177 = pneg %p73
        $region14: #{tpu_custom_call.1} parent=11 // pred_check_branch
          %179 = sbr.rel (%p177) target = $region16
        $region15: #{tpu_custom_call.1} parent=11 // pred_region
          _
        $region16: #{tpu_custom_call.1} parent=11 // pred_fallthru
          _
        // Predicated region
        $region17: #{tpu_custom_call.1} parent=11 // pred_check
          %p180 = pneg %p94
        $region18: #{tpu_custom_call.1} parent=11 // pred_check_branch
          %182 = sbr.rel (%p180) target = $region20
        $region19: #{tpu_custom_call.1} parent=11 // pred_region
          _
        $region20: #{tpu_custom_call.1} parent=11 // pred_fallthru
          _
        // Predicated region
        $region21: #{tpu_custom_call.1} parent=11 // pred_check
          %p183 = pneg %p115
        $region22: #{tpu_custom_call.1} parent=11 // pred_check_branch
          %185 = sbr.rel (%p183) target = $region24
        $region23: #{tpu_custom_call.1} parent=11 // pred_region
          _
        $region24: #{tpu_custom_call.1} parent=11 // pred_fallthru
          _
        // Predicated region
        $region25: #{tpu_custom_call.1} parent=11 // pred_check
          %p186 = pneg %p136
        $region26: #{tpu_custom_call.1} parent=11 // pred_check_branch
          %188 = sbr.rel (%p186) target = $region28
        $region27: #{tpu_custom_call.1} parent=11 // pred_region
          _
        $region28: #{tpu_custom_call.1} parent=11 // pred_fallthru
          _
      $region12: #{tpu_custom_call.1} parent=5 // pred_fallthru
        _
      %p189 = scmp.lt.s32.totalorder %s12, 4
      // Predicated region
      $region29: #{tpu_custom_call.1} parent=5 // pred_check
        %p190 = pneg %p189
      $region30: #{tpu_custom_call.1} parent=5 // pred_check_branch
        %192 = sbr.rel (%p190) target = $region32
      $region31: #{tpu_custom_call.1} parent=5 // pred_region
        // Predicated region
        $region33: #{tpu_custom_call.1} parent=31 // pred_check
          %p193 = pneg %p46
        $region34: #{tpu_custom_call.1} parent=31 // pred_check_branch
          %195 = sbr.rel (%p193) target = $region36
        $region35: #{tpu_custom_call.1} parent=31 // pred_region
          %s196 = sand.u32 %s36, 1
          %s197 = sand.u32 %s36, 1
          %s198 = smul.addr %s197, 16
          %s199 = scalar_lea.vmem [#allocation3], %s198
          %s200 = smul.u32 2, %s19
          %s201 = smul.u32 2, %s20
          %s202 = smul.addr %s200, 8
          %s203 = sadd.s32 %s201, %s202
          %s204 = smul.addr %s203, 4
          %s205 = scalar_lea.vmem %s0, %s204
          // Predicated region
          $region37: #{tpu_custom_call.1} parent=35 // pred_check
            _
          $region38: #{tpu_custom_call.1} parent=35 // pred_check_branch
            %207 = sbr.rel (0) target = $region40
          $region39: #{tpu_custom_call.1} parent=35 // pred_region
            // Predicated region
            $region41: #{tpu_custom_call.1} parent=39 // pred_check
              _
            $region42: #{tpu_custom_call.1} parent=39 // pred_check_branch
              %209 = sbr.rel (0) target = $region44
            $region43: #{tpu_custom_call.1} parent=39 // pred_region
              // Predicated region
              $region56: #{tpu_custom_call.1} parent=43 // pred_check
                _
              $region57: #{tpu_custom_call.1} parent=43 // pred_check_branch
                %226 = sbr.rel (0) target = $region59
              $region58: #{tpu_custom_call.1} parent=43 // pred_region
                loop: start=0, step=1, limit=1
                $region60: #{tpu_custom_call.1} parent=58 // loop_pre_header
                  _
                $region61: #{tpu_custom_call.1} parent=58 // loop_header
                  %s228 = sphi 0, %s232
                  %p229 = scmp.ge.s32.totalorder %s228, 1
                  %s233 = sphi %s205, %s205
                  %s234 = sphi %s199, %s199
                $region62: #{tpu_custom_call.1} parent=58 // loop_header_branch
                  %231 = sbr.rel (%p229) target = $region66
                $region63: #{tpu_custom_call.1} parent=58 // loop_body
                  %v235 = vld [vmem:[%s233] sm:$0xff]
                  %236 = vst [vmem:[%s234] sm:$0xff] %v235
                  %v237 = vld [vmem:[%s233 + $0x20] sm:$0xff]
                  %238 = vst [vmem:[%s234 + $0x8] sm:$0xff] %v237
                $region64: #{tpu_custom_call.1} parent=58 // loop_footer
                  %s232 = sadd.s32 1, %s228
                $region65: #{tpu_custom_call.1} parent=58 // loop_footer_branch
                  %227 = sbr.rel target = $region61
                $region66: #{tpu_custom_call.1} parent=58 // loop_exit
                  _
              $region59: #{tpu_custom_call.1} parent=43 // pred_fallthru
                _
              // Predicated region
              $region67: #{tpu_custom_call.1} parent=43 // pred_check
                _
              $region68: #{tpu_custom_call.1} parent=43 // pred_check_branch
                %240 = sbr.rel target = $region70
              $region69: #{tpu_custom_call.1} parent=43 // pred_region
                _
              $region70: #{tpu_custom_call.1} parent=43 // pred_fallthru
                _
            $region44: #{tpu_custom_call.1} parent=39 // pred_fallthru
              _
            // Predicated region
            $region45: #{tpu_custom_call.1} parent=39 // pred_check
              _
            $region46: #{tpu_custom_call.1} parent=39 // pred_check_branch
              %211 = sbr.rel target = $region48
            $region47: #{tpu_custom_call.1} parent=39 // pred_region
              loop: start=0, step=1, limit=1
              $region49: #{tpu_custom_call.1} parent=47 // loop_pre_header
                _
              $region50: #{tpu_custom_call.1} parent=47 // loop_header
                %s214 = sphi 0, %s218
                %p215 = scmp.ge.s32.totalorder %s214, 1
                %s219 = sphi %s205, %s205
                %s220 = sphi %s199, %s199
              $region51: #{tpu_custom_call.1} parent=47 // loop_header_branch
                %217 = sbr.rel (%p215) target = $region55
              $region52: #{tpu_custom_call.1} parent=47 // loop_body
                %v221 = vld [vmem:[%s219] sm:$0xff]
                %222 = vst [vmem:[%s220] sm:$0xff] %v221
                %v223 = vld [vmem:[%s219 + $0x20] sm:$0xff]
                %224 = vst [vmem:[%s220 + $0x8] sm:$0xff] %v223
              $region53: #{tpu_custom_call.1} parent=47 // loop_footer
                %s218 = sadd.s32 1, %s214
              $region54: #{tpu_custom_call.1} parent=47 // loop_footer_branch
                %213 = sbr.rel target = $region50
              $region55: #{tpu_custom_call.1} parent=47 // loop_exit
                _
            $region48: #{tpu_custom_call.1} parent=39 // pred_fallthru
              _
          $region40: #{tpu_custom_call.1} parent=35 // pred_fallthru
            _
          %241 = vnop
        $region36: #{tpu_custom_call.1} parent=31 // pred_fallthru
          _
      $region32: #{tpu_custom_call.1} parent=5 // pred_fallthru
        _
      %p242 = scmp.le.s32.totalorder 1, %s12
      %p243 = scmp.lt.s32.totalorder %s12, 5
      %p244 = pnand %p242, %p243
      %p245 = pneg %p244
      // Predicated region
      $region71: #{tpu_custom_call.1} parent=5 // pred_check
        _
      $region72: #{tpu_custom_call.1} parent=5 // pred_check_branch
        %247 = sbr.rel (%p244) target = $region74
      $region73: #{tpu_custom_call.1} parent=5 // pred_region
        %s248 = ssub.s32 %s12, 1
        %s249 = sand.u32 %s39, 1
        %s250 = sand.u32 %s39, 1
        %s251 = smul.addr %s250, 16
        %s252 = scalar_lea.vmem [#allocation3], %s251
        // Predicated region
        $region75: #{tpu_custom_call.1} parent=73 // pred_check
          %p253 = pneg %p52
        $region76: #{tpu_custom_call.1} parent=73 // pred_check_branch
          %255 = sbr.rel (%p253) target = $region78
        $region77: #{tpu_custom_call.1} parent=73 // pred_region
          _
        $region78: #{tpu_custom_call.1} parent=73 // pred_fallthru
          _
        %s256 = sand.u32 %s39, 1
        %s257 = sand.u32 %s39, 1
        %s258 = smul.addr %s257, 16
        %s259 = scalar_lea.vmem [#allocation3], %s258
        %p260 = pneg %p52
        %p261 = pneg %p49
        %p262 = pneg %p73
        %p263 = pneg %p70
        %p264 = pneg %p94
        %p265 = pneg %p91
        %p266 = pneg %p115
        %p267 = pneg %p112
        %p268 = pneg %p136
        %p269 = pneg %p133
        %p270 = pneg %p162
        %p271 = pneg %p159
        %s272 = smul.u32 2, %s21
        %s273 = smul.u32 2, %s22
        %s274 = smul.u32 2, %s21
        %p275 = scmp.eq.s32.totalorder %s22, 0
        // Predicated region
        $region79: #{tpu_custom_call.1} parent=73 // pred_check
          %p276 = pneg %p275
        $region80: #{tpu_custom_call.1} parent=73 // pred_check_branch
          %278 = sbr.rel (%p276) target = $region82
        $region81: #{tpu_custom_call.1} parent=73 // pred_region
          %vm279 = vcmask 7168
          %280 = vst.msk [vmem:[#allocation2] sm:$0xff] %vm279, 0.0
          %281 = vst.msk [vmem:[#allocation2 + $0x8] sm:$0xff] %vm279, 0.0
          %282 = vst.msk [vmem:[#allocation2 + $0x10] sm:$0xff] %vm279, 0.0
          %283 = vst.msk [vmem:[#allocation2 + $0x18] sm:$0xff] %vm279, 0.0
          %284 = vst.msk [vmem:[#allocation2 + $0x20] sm:$0xff] %vm279, 0.0
          %285 = vst.msk [vmem:[#allocation2 + $0x28] sm:$0xff] %vm279, 0.0
          %286 = vst.msk [vmem:[#allocation2 + $0x30] sm:$0xff] %vm279, 0.0
          %287 = vst.msk [vmem:[#allocation2 + $0x38] sm:$0xff] %vm279, 0.0
        $region82: #{tpu_custom_call.1} parent=73 // pred_fallthru
          _
        %v288 = vld [vmem:[%s252] sm:$0x77]
        %v289 = vld [vmem:[%s252 + $0x8] sm:$0x77]
        %v290 = vld [vmem:[%s1] sm:$0xff]
        %v291 = vld [vmem:[%s1 + $0x8] sm:$0xff]
        %v292 = vld [vmem:[%s1 + $0x10] sm:$0xff]
        %v293 = vld [vmem:[%s1 + $0x18] sm:$0xff]
        %v294 = vld [vmem:[%s1 + $0x20] sm:$0xff]
        %v295 = vld [vmem:[%s1 + $0x28] sm:$0xff]
        %v296 = vld [vmem:[%s1 + $0x30] sm:$0xff]
        %v297 = vld [vmem:[%s1 + $0x38] sm:$0xff]
        %v298 = vld [vmem:[%s1 + $0x40] sm:$0xff]
        %v299 = vld [vmem:[%s1 + $0x48] sm:$0xff]
        %v300 = vld [vmem:[%s1 + $0x50] sm:$0xff]
        %v301 = vld [vmem:[%s1 + $0x58] sm:$0xff]
        %303 = vset.pattern.permute.xlu0 0
        %304 = vperm.xlu0 %303, %v290
        %v305 = vpop.permute.xlu0 %304
        %308 = vset.pattern.permute.xlu0 0
        %309 = vperm.xlu0 %308, %v291
        %v310 = vpop.permute.xlu0 %309
        %313 = vset.pattern.permute.xlu0 0
        %314 = vperm.xlu0 %313, %v292
        %v315 = vpop.permute.xlu0 %314
        %318 = vset.pattern.permute.xlu0 0
        %319 = vperm.xlu0 %318, %v293
        %v320 = vpop.permute.xlu0 %319
        %v324 = vlaneseq
        %v325 = vshrl.u32 %v324, 7
        %v326 = vsub.s32 0, %v325
        %v327 = vrot.slane %v288, %v326
        %v328 = vlaneseq
        %v329 = vshrl.u32 %v328, 7
        %v330 = vsub.s32 4, %v329
        %v331 = vrot.slane %v288, %v330
        %v332 = vlaneseq
        %v333 = vshrl.u32 %v332, 7
        %v334 = vsub.s32 0, %v333
        %v335 = vrot.slane %v289, %v334
        %v336 = vlaneseq
        %v337 = vshrl.u32 %v336, 7
        %v338 = vsub.s32 4, %v337
        %v339 = vrot.slane %v289, %v338
        %v344 = vlaneseq
        %v345 = vshrl.u32 %v344, 7
        %v346 = vsub.s32 0, %v345
        %v347 = vrot.slane %v327, %v346
        %v348 = vlaneseq
        %v349 = vshrl.u32 %v348, 7
        %v350 = vsub.s32 0, %v349
        %v351 = vrot.slane %v331, %v350
        %v352 = vlaneseq
        %v353 = vshrl.u32 %v352, 7
        %v354 = vsub.s32 0, %v353
        %v355 = vrot.slane %v335, %v354
        %v356 = vlaneseq
        %v357 = vshrl.u32 %v356, 7
        %v358 = vsub.s32 0, %v357
        %v359 = vrot.slane %v339, %v358
        %v360 = vmul.f32 %v305, %v347
        %v361 = vmul.f32 %v305, %v351
        %v362 = vmul.f32 %v310, %v347
        %v363 = vmul.f32 %v310, %v351
        %v364 = vmul.f32 %v315, %v347
        %v365 = vmul.f32 %v315, %v351
        %v366 = vmul.f32 %v320, %v347
        %v367 = vmul.f32 %v320, %v351
        %v368 = vmul.f32 %v305, %v355
        %v369 = vmul.f32 %v305, %v359
        %v370 = vmul.f32 %v310, %v355
        %v371 = vmul.f32 %v310, %v359
        %v372 = vmul.f32 %v315, %v355
        %v373 = vmul.f32 %v315, %v359
        %v374 = vmul.f32 %v320, %v355
        %v375 = vmul.f32 %v320, %v359
        %377 = vset.pattern.permute.xlu0 0
        %378 = vperm.xlu0 %377, %v294
        %v379 = vpop.permute.xlu0 %378
        %382 = vset.pattern.permute.xlu0 0
        %383 = vperm.xlu0 %382, %v295
        %v384 = vpop.permute.xlu0 %383
        %387 = vset.pattern.permute.xlu0 0
        %388 = vperm.xlu0 %387, %v296
        %v389 = vpop.permute.xlu0 %388
        %392 = vset.pattern.permute.xlu0 0
        %393 = vperm.xlu0 %392, %v297
        %v394 = vpop.permute.xlu0 %393
        %v396 = vlaneseq
        %v397 = vshrl.u32 %v396, 7
        %v398 = vsub.s32 1, %v397
        %v399 = vrot.slane %v288, %v398
        %v400 = vlaneseq
        %v401 = vshrl.u32 %v400, 7
        %v402 = vsub.s32 5, %v401
        %v403 = vrot.slane %v288, %v402
        %v404 = vlaneseq
        %v405 = vshrl.u32 %v404, 7
        %v406 = vsub.s32 1, %v405
        %v407 = vrot.slane %v289, %v406
        %v408 = vlaneseq
        %v409 = vshrl.u32 %v408, 7
        %v410 = vsub.s32 5, %v409
        %v411 = vrot.slane %v289, %v410
        %v416 = vlaneseq
        %v417 = vshrl.u32 %v416, 7
        %v418 = vsub.s32 1, %v417
        %v419 = vrot.slane %v399, %v418
        %v420 = vlaneseq
        %v421 = vshrl.u32 %v420, 7
        %v422 = vsub.s32 1, %v421
        %v423 = vrot.slane %v403, %v422
        %v424 = vlaneseq
        %v425 = vshrl.u32 %v424, 7
        %v426 = vsub.s32 1, %v425
        %v427 = vrot.slane %v407, %v426
        %v428 = vlaneseq
        %v429 = vshrl.u32 %v428, 7
        %v430 = vsub.s32 1, %v429
        %v431 = vrot.slane %v411, %v430
        %v432 = vmul.f32 %v379, %v419
        %v433 = vmul.f32 %v379, %v423
        %v434 = vmul.f32 %v384, %v419
        %v435 = vmul.f32 %v384, %v423
        %v436 = vmul.f32 %v389, %v419
        %v437 = vmul.f32 %v389, %v423
        %v438 = vmul.f32 %v394, %v419
        %v439 = vmul.f32 %v394, %v423
        %v440 = vmul.f32 %v379, %v427
        %v441 = vmul.f32 %v379, %v431
        %v442 = vmul.f32 %v384, %v427
        %v443 = vmul.f32 %v384, %v431
        %v444 = vmul.f32 %v389, %v427
        %v445 = vmul.f32 %v389, %v431
        %v446 = vmul.f32 %v394, %v427
        %v447 = vmul.f32 %v394, %v431
        %v448 = vadd.f32 %v360, %v432
        %v449 = vadd.f32 %v361, %v433
        %v450 = vadd.f32 %v362, %v434
        %v451 = vadd.f32 %v363, %v435
        %v452 = vadd.f32 %v364, %v436
        %v453 = vadd.f32 %v365, %v437
        %v454 = vadd.f32 %v366, %v438
        %v455 = vadd.f32 %v367, %v439
        %v456 = vadd.f32 %v368, %v440
        %v457 = vadd.f32 %v369, %v441
        %v458 = vadd.f32 %v370, %v442
        %v459 = vadd.f32 %v371, %v443
        %v460 = vadd.f32 %v372, %v444
        %v461 = vadd.f32 %v373, %v445
        %v462 = vadd.f32 %v374, %v446
        %v463 = vadd.f32 %v375, %v447
        %465 = vset.pattern.permute.xlu0 0
        %466 = vperm.xlu0 %465, %v298
        %v467 = vpop.permute.xlu0 %466
        %470 = vset.pattern.permute.xlu0 0
        %471 = vperm.xlu0 %470, %v299
        %v472 = vpop.permute.xlu0 %471
        %475 = vset.pattern.permute.xlu0 0
        %476 = vperm.xlu0 %475, %v300
        %v477 = vpop.permute.xlu0 %476
        %480 = vset.pattern.permute.xlu0 0
        %481 = vperm.xlu0 %480, %v301
        %v482 = vpop.permute.xlu0 %481
        %v484 = vlaneseq
        %v485 = vshrl.u32 %v484, 7
        %v486 = vsub.s32 2, %v485
        %v487 = vrot.slane %v288, %v486
        %v488 = vlaneseq
        %v489 = vshrl.u32 %v488, 7
        %v490 = vsub.s32 6, %v489
        %v491 = vrot.slane %v288, %v490
        %v492 = vlaneseq
        %v493 = vshrl.u32 %v492, 7
        %v494 = vsub.s32 2, %v493
        %v495 = vrot.slane %v289, %v494
        %v496 = vlaneseq
        %v497 = vshrl.u32 %v496, 7
        %v498 = vsub.s32 6, %v497
        %v499 = vrot.slane %v289, %v498
        %v504 = vlaneseq
        %v505 = vshrl.u32 %v504, 7
        %v506 = vsub.s32 2, %v505
        %v507 = vrot.slane %v487, %v506
        %v508 = vlaneseq
        %v509 = vshrl.u32 %v508, 7
        %v510 = vsub.s32 2, %v509
        %v511 = vrot.slane %v491, %v510
        %v512 = vlaneseq
        %v513 = vshrl.u32 %v512, 7
        %v514 = vsub.s32 2, %v513
        %v515 = vrot.slane %v495, %v514
        %v516 = vlaneseq
        %v517 = vshrl.u32 %v516, 7
        %v518 = vsub.s32 2, %v517
        %v519 = vrot.slane %v499, %v518
        %v520 = vmul.f32 %v467, %v507
        %v521 = vmul.f32 %v467, %v511
        %v522 = vmul.f32 %v472, %v507
        %v523 = vmul.f32 %v472, %v511
        %v524 = vmul.f32 %v477, %v507
        %v525 = vmul.f32 %v477, %v511
        %v526 = vmul.f32 %v482, %v507
        %v527 = vmul.f32 %v482, %v511
        %v528 = vmul.f32 %v467, %v515
        %v529 = vmul.f32 %v467, %v519
        %v530 = vmul.f32 %v472, %v515
        %v531 = vmul.f32 %v472, %v519
        %v532 = vmul.f32 %v477, %v515
        %v533 = vmul.f32 %v477, %v519
        %v534 = vmul.f32 %v482, %v515
        %v535 = vmul.f32 %v482, %v519
        %v536 = vadd.f32 %v448, %v520
        %v537 = vadd.f32 %v449, %v521
        %v538 = vadd.f32 %v450, %v522
        %v539 = vadd.f32 %v451, %v523
        %v540 = vadd.f32 %v452, %v524
        %v541 = vadd.f32 %v453, %v525
        %v542 = vadd.f32 %v454, %v526
        %v543 = vadd.f32 %v455, %v527
        %v544 = vadd.f32 %v456, %v528
        %v545 = vadd.f32 %v457, %v529
        %v546 = vadd.f32 %v458, %v530
        %v547 = vadd.f32 %v459, %v531
        %v548 = vadd.f32 %v460, %v532
        %v549 = vadd.f32 %v461, %v533
        %v550 = vadd.f32 %v462, %v534
        %v551 = vadd.f32 %v463, %v535
        %v552 = vld [vmem:[%s2] sm:$0xff]
        %v553 = vld [vmem:[%s2 + $0x8] sm:$0xff]
        %v554 = vld [vmem:[%s2 + $0x10] sm:$0xff]
        %v555 = vld [vmem:[%s2 + $0x18] sm:$0xff]
        %557 = vset.pattern.permute.xlu0 0
        %558 = vperm.xlu0 %557, %v552
        %v559 = vpop.permute.xlu0 %558
        %562 = vset.pattern.permute.xlu0 0
        %563 = vperm.xlu0 %562, %v553
        %v564 = vpop.permute.xlu0 %563
        %567 = vset.pattern.permute.xlu0 0
        %568 = vperm.xlu0 %567, %v554
        %v569 = vpop.permute.xlu0 %568
        %572 = vset.pattern.permute.xlu0 0
        %573 = vperm.xlu0 %572, %v555
        %v574 = vpop.permute.xlu0 %573
        %v576 = vadd.f32 %v536, %v559
        %v577 = vadd.f32 %v537, %v559
        %v578 = vadd.f32 %v538, %v564
        %v579 = vadd.f32 %v539, %v564
        %v580 = vadd.f32 %v540, %v569
        %v581 = vadd.f32 %v541, %v569
        %v582 = vadd.f32 %v542, %v574
        %v583 = vadd.f32 %v543, %v574
        %v584 = vadd.f32 %v544, %v559
        %v585 = vadd.f32 %v545, %v559
        %v586 = vadd.f32 %v546, %v564
        %v587 = vadd.f32 %v547, %v564
        %v588 = vadd.f32 %v548, %v569
        %v589 = vadd.f32 %v549, %v569
        %v590 = vadd.f32 %v550, %v574
        %v591 = vadd.f32 %v551, %v574
        %v592 = vmax.f32 %v576, 0.0
        %v593 = vmax.f32 %v577, 0.0
        %v594 = vmax.f32 %v578, 0.0
        %v595 = vmax.f32 %v579, 0.0
        %v596 = vmax.f32 %v580, 0.0
        %v597 = vmax.f32 %v581, 0.0
        %v598 = vmax.f32 %v582, 0.0
        %v599 = vmax.f32 %v583, 0.0
        %v600 = vmax.f32 %v584, 0.0
        %v601 = vmax.f32 %v585, 0.0
        %v602 = vmax.f32 %v586, 0.0
        %v603 = vmax.f32 %v587, 0.0
        %v604 = vmax.f32 %v588, 0.0
        %v605 = vmax.f32 %v589, 0.0
        %v606 = vmax.f32 %v590, 0.0
        %v607 = vmax.f32 %v591, 0.0
        %v608 = vld [vmem:[#allocation2] sm:$0xff]
        %v609 = vld [vmem:[#allocation2 + $0x8] sm:$0xff]
        %v610 = vld [vmem:[#allocation2 + $0x10] sm:$0xff]
        %v611 = vld [vmem:[#allocation2 + $0x18] sm:$0xff]
        %v612 = vld [vmem:[#allocation2 + $0x20] sm:$0xff]
        %v613 = vld [vmem:[#allocation2 + $0x28] sm:$0xff]
        %v614 = vld [vmem:[#allocation2 + $0x30] sm:$0xff]
        %v615 = vld [vmem:[#allocation2 + $0x38] sm:$0xff]
        %v616 = vadd.f32 %v592, %v593
        %617 = vadd.xlane.f32.xlu0 %v616
        %v618 = vpop.xlane.xlu0 %617
        %v619 = vadd.f32 %v594, %v595
        %620 = vadd.xlane.f32.xlu0 %v619
        %v621 = vpop.xlane.xlu0 %620
        %v622 = vadd.f32 %v596, %v597
        %623 = vadd.xlane.f32.xlu0 %v622
        %v624 = vpop.xlane.xlu0 %623
        %v625 = vadd.f32 %v598, %v599
        %626 = vadd.xlane.f32.xlu0 %v625
        %v627 = vpop.xlane.xlu0 %626
        %v628 = vadd.f32 %v600, %v601
        %629 = vadd.xlane.f32.xlu0 %v628
        %v630 = vpop.xlane.xlu0 %629
        %v631 = vadd.f32 %v602, %v603
        %632 = vadd.xlane.f32.xlu0 %v631
        %v633 = vpop.xlane.xlu0 %632
        %v634 = vadd.f32 %v604, %v605
        %635 = vadd.xlane.f32.xlu0 %v634
        %v636 = vpop.xlane.xlu0 %635
        %v637 = vadd.f32 %v606, %v607
        %638 = vadd.xlane.f32.xlu0 %v637
        %v639 = vpop.xlane.xlu0 %638
        %v640 = vadd.f32 %v608, %v618
        %v641 = vadd.f32 %v609, %v621
        %v642 = vadd.f32 %v610, %v624
        %v643 = vadd.f32 %v611, %v627
        %v644 = vadd.f32 %v612, %v630
        %v645 = vadd.f32 %v613, %v633
        %v646 = vadd.f32 %v614, %v636
        %v647 = vadd.f32 %v615, %v639
        %vm648 = vcmask 7168
        %649 = vst.msk [vmem:[#allocation2] sm:$0xff] %vm648, %v640
        %650 = vst.msk [vmem:[#allocation2 + $0x8] sm:$0xff] %vm648, %v641
        %651 = vst.msk [vmem:[#allocation2 + $0x10] sm:$0xff] %vm648, %v642
        %652 = vst.msk [vmem:[#allocation2 + $0x18] sm:$0xff] %vm648, %v643
        %653 = vst.msk [vmem:[#allocation2 + $0x20] sm:$0xff] %vm648, %v644
        %654 = vst.msk [vmem:[#allocation2 + $0x28] sm:$0xff] %vm648, %v645
        %655 = vst.msk [vmem:[#allocation2 + $0x30] sm:$0xff] %vm648, %v646
        %656 = vst.msk [vmem:[#allocation2 + $0x38] sm:$0xff] %vm648, %v647
        %p657 = scmp.eq.s32.totalorder %s22, 3
        // Predicated region
        $region83: #{tpu_custom_call.1} parent=73 // pred_check
          %p658 = pneg %p657
        $region84: #{tpu_custom_call.1} parent=73 // pred_check_branch
          %660 = sbr.rel (%p658) target = $region86
        $region85: #{tpu_custom_call.1} parent=73 // pred_region
          %v661 = vld [vmem:[#allocation2] sm:$0xff]
          %v662 = vld [vmem:[#allocation2 + $0x8] sm:$0xff]
          %v663 = vld [vmem:[#allocation2 + $0x10] sm:$0xff]
          %v664 = vld [vmem:[#allocation2 + $0x18] sm:$0xff]
          %v665 = vld [vmem:[#allocation2 + $0x20] sm:$0xff]
          %v666 = vld [vmem:[#allocation2 + $0x28] sm:$0xff]
          %v667 = vld [vmem:[#allocation2 + $0x30] sm:$0xff]
          %v668 = vld [vmem:[#allocation2 + $0x38] sm:$0xff]
          %v669 = vmul.f32 %v661, 0.0009765625
          %v670 = vmul.f32 %v662, 0.0009765625
          %v671 = vmul.f32 %v663, 0.0009765625
          %v672 = vmul.f32 %v664, 0.0009765625
          %v673 = vmul.f32 %v665, 0.0009765625
          %v674 = vmul.f32 %v666, 0.0009765625
          %v675 = vmul.f32 %v667, 0.0009765625
          %v676 = vmul.f32 %v668, 0.0009765625
          %v677 = vld [vmem:[%s3] sm:$0xff]
          %v678 = vld [vmem:[%s3 + $0x8] sm:$0xff]
          %v679 = vld [vmem:[%s3 + $0x10] sm:$0xff]
          %v680 = vld [vmem:[%s3 + $0x18] sm:$0xff]
          %682 = vset.pattern.permute.xlu0 0
          %683 = vperm.xlu0 %682, %v669
          %v684 = vpop.permute.xlu0 %683
          %687 = vset.pattern.permute.xlu0 0
          %688 = vperm.xlu0 %687, %v673
          %v689 = vpop.permute.xlu0 %688
          %v691 = vmul.f32 %v684, %v677
          %v692 = vmul.f32 %v689, %v677
          %v695 = vrot.slane %v691, 1
          %v696 = vrot.slane %v692, 1
          %v699 = vadd.f32 %v691, %v695
          %v700 = vadd.f32 %v692, %v696
          %v701 = vrot.slane %v691, 2
          %v702 = vrot.slane %v692, 2
          %v705 = vadd.f32 %v699, %v701
          %v706 = vadd.f32 %v700, %v702
          %v707 = vrot.slane %v691, 3
          %v708 = vrot.slane %v692, 3
          %v711 = vadd.f32 %v705, %v707
          %v712 = vadd.f32 %v706, %v708
          %v713 = vrot.slane %v691, 4
          %v714 = vrot.slane %v692, 4
          %v717 = vadd.f32 %v711, %v713
          %v718 = vadd.f32 %v712, %v714
          %v719 = vrot.slane %v691, 5
          %v720 = vrot.slane %v692, 5
          %v723 = vadd.f32 %v717, %v719
          %v724 = vadd.f32 %v718, %v720
          %v725 = vrot.slane %v691, 6
          %v726 = vrot.slane %v692, 6
          %v729 = vadd.f32 %v723, %v725
          %v730 = vadd.f32 %v724, %v726
          %v731 = vrot.slane %v691, 7
          %v732 = vrot.slane %v692, 7
          %v735 = vadd.f32 %v729, %v731
          %v736 = vadd.f32 %v730, %v732
          %738 = vset.pattern.permute.xlu0 0
          %739 = vperm.xlu0 %738, %v670
          %v740 = vpop.permute.xlu0 %739
          %743 = vset.pattern.permute.xlu0 0
          %744 = vperm.xlu0 %743, %v674
          %v745 = vpop.permute.xlu0 %744
          %v747 = vmul.f32 %v740, %v678
          %v748 = vmul.f32 %v745, %v678
          %v749 = vadd.f32 %v735, %v747
          %v750 = vadd.f32 %v736, %v748
          %v753 = vrot.slane %v747, 1
          %v754 = vrot.slane %v748, 1
          %v757 = vadd.f32 %v749, %v753
          %v758 = vadd.f32 %v750, %v754
          %v759 = vrot.slane %v747, 2
          %v760 = vrot.slane %v748, 2
          %v763 = vadd.f32 %v757, %v759
          %v764 = vadd.f32 %v758, %v760
          %v765 = vrot.slane %v747, 3
          %v766 = vrot.slane %v748, 3
          %v769 = vadd.f32 %v763, %v765
          %v770 = vadd.f32 %v764, %v766
          %v771 = vrot.slane %v747, 4
          %v772 = vrot.slane %v748, 4
          %v775 = vadd.f32 %v769, %v771
          %v776 = vadd.f32 %v770, %v772
          %v777 = vrot.slane %v747, 5
          %v778 = vrot.slane %v748, 5
          %v781 = vadd.f32 %v775, %v777
          %v782 = vadd.f32 %v776, %v778
          %v783 = vrot.slane %v747, 6
          %v784 = vrot.slane %v748, 6
          %v787 = vadd.f32 %v781, %v783
          %v788 = vadd.f32 %v782, %v784
          %v789 = vrot.slane %v747, 7
          %v790 = vrot.slane %v748, 7
          %v793 = vadd.f32 %v787, %v789
          %v794 = vadd.f32 %v788, %v790
          %796 = vset.pattern.permute.xlu0 0
          %797 = vperm.xlu0 %796, %v671
          %v798 = vpop.permute.xlu0 %797
          %801 = vset.pattern.permute.xlu0 0
          %802 = vperm.xlu0 %801, %v675
          %v803 = vpop.permute.xlu0 %802
          %v805 = vmul.f32 %v798, %v679
          %v806 = vmul.f32 %v803, %v679
          %v807 = vadd.f32 %v793, %v805
          %v808 = vadd.f32 %v794, %v806
          %v811 = vrot.slane %v805, 1
          %v812 = vrot.slane %v806, 1
          %v815 = vadd.f32 %v807, %v811
          %v816 = vadd.f32 %v808, %v812
          %v817 = vrot.slane %v805, 2
          %v818 = vrot.slane %v806, 2
          %v821 = vadd.f32 %v815, %v817
          %v822 = vadd.f32 %v816, %v818
          %v823 = vrot.slane %v805, 3
          %v824 = vrot.slane %v806, 3
          %v827 = vadd.f32 %v821, %v823
          %v828 = vadd.f32 %v822, %v824
          %v829 = vrot.slane %v805, 4
          %v830 = vrot.slane %v806, 4
          %v833 = vadd.f32 %v827, %v829
          %v834 = vadd.f32 %v828, %v830
          %v835 = vrot.slane %v805, 5
          %v836 = vrot.slane %v806, 5
          %v839 = vadd.f32 %v833, %v835
          %v840 = vadd.f32 %v834, %v836
          %v841 = vrot.slane %v805, 6
          %v842 = vrot.slane %v806, 6
          %v845 = vadd.f32 %v839, %v841
          %v846 = vadd.f32 %v840, %v842
          %v847 = vrot.slane %v805, 7
          %v848 = vrot.slane %v806, 7
          %v851 = vadd.f32 %v845, %v847
          %v852 = vadd.f32 %v846, %v848
          %854 = vset.pattern.permute.xlu0 0
          %855 = vperm.xlu0 %854, %v672
          %v856 = vpop.permute.xlu0 %855
          %859 = vset.pattern.permute.xlu0 0
          %860 = vperm.xlu0 %859, %v676
          %v861 = vpop.permute.xlu0 %860
          %v863 = vmul.f32 %v856, %v680
          %v864 = vmul.f32 %v861, %v680
          %v865 = vadd.f32 %v851, %v863
          %v866 = vadd.f32 %v852, %v864
          %v869 = vrot.slane %v863, 1
          %v870 = vrot.slane %v864, 1
          %v873 = vadd.f32 %v865, %v869
          %v874 = vadd.f32 %v866, %v870
          %v875 = vrot.slane %v863, 2
          %v876 = vrot.slane %v864, 2
          %v879 = vadd.f32 %v873, %v875
          %v880 = vadd.f32 %v874, %v876
          %v881 = vrot.slane %v863, 3
          %v882 = vrot.slane %v864, 3
          %v885 = vadd.f32 %v879, %v881
          %v886 = vadd.f32 %v880, %v882
          %v887 = vrot.slane %v863, 4
          %v888 = vrot.slane %v864, 4
          %v891 = vadd.f32 %v885, %v887
          %v892 = vadd.f32 %v886, %v888
          %v893 = vrot.slane %v863, 5
          %v894 = vrot.slane %v864, 5
          %v897 = vadd.f32 %v891, %v893
          %v898 = vadd.f32 %v892, %v894
          %v899 = vrot.slane %v863, 6
          %v900 = vrot.slane %v864, 6
          %v903 = vadd.f32 %v897, %v899
          %v904 = vadd.f32 %v898, %v900
          %v905 = vrot.slane %v863, 7
          %v906 = vrot.slane %v864, 7
          %v909 = vadd.f32 %v903, %v905
          %v910 = vadd.f32 %v904, %v906
          %v911 = vld [vmem:[%s4] sm:$0x1]
          %v912 = vadd.f32 %v909, %v911
          %v913 = vadd.f32 %v910, %v911
          %914 = vst [vmem:[#allocation4] sm:$0x1] %v912
          %915 = vst [vmem:[#allocation4 + $0x1] sm:$0x1] %v913
        $region86: #{tpu_custom_call.1} parent=73 // pred_fallthru
          _
        // Predicated region
        $region87: #{tpu_custom_call.1} parent=73 // pred_check
          %p916 = pneg %p159
        $region88: #{tpu_custom_call.1} parent=73 // pred_check_branch
          %918 = sbr.rel (%p916) target = $region90
        $region89: #{tpu_custom_call.1} parent=73 // pred_region
          %s919 = smul.u32 2, %s21
          %s921 = ssub.s32 32, 32
          %922 = vsyncadd [#allocation5], %s921
          %s923 = smul.addr %s919, 16
          %s924 = scalar_lea.hbm %s5, %s923
          %s925 = sshll.u32 [#allocation4], 4
          %s926 = int_to_ptr.vmem [resolvable:$true] %s925
          %931 = dma.vmem_to_hbm [thread:$0]  %s926, 32, %s924, [#allocation5], 16, 16, 1
        $region90: #{tpu_custom_call.1} parent=73 // pred_fallthru
          _
        // Predicated region
        $region91: #{tpu_custom_call.1} parent=73 // pred_check
          %p932 = pneg %p159
        $region92: #{tpu_custom_call.1} parent=73 // pred_check_branch
          %934 = sbr.rel (%p932) target = $region94
        $region93: #{tpu_custom_call.1} parent=73 // pred_region
          %935 = dma.done [#allocation5], 32
        $region94: #{tpu_custom_call.1} parent=73 // pred_fallthru
          _
      $region74: #{tpu_custom_call.1} parent=5 // pred_fallthru
        _
      %p936 = scmp.le.s32.totalorder 2, %s12
      // Predicated region
      $region95: #{tpu_custom_call.1} parent=5 // pred_check
        %p937 = pneg %p936
      $region96: #{tpu_custom_call.1} parent=5 // pred_check_branch
        %939 = sbr.rel (%p937) target = $region98
      $region97: #{tpu_custom_call.1} parent=5 // pred_region
        %s940 = ssub.s32 %s12, 2
      $region98: #{tpu_custom_call.1} parent=5 // pred_fallthru
        _
    $region6: #{tpu_custom_call.1} parent=1 // loop_footer
      %s16 = sadd.s32 1, %s12
    $region7: #{tpu_custom_call.1} parent=1 // loop_footer_branch
      %11 = sbr.rel target = $region3
    $region8: #{tpu_custom_call.1} parent=1 // loop_exit
      _
    %941 = vsyncpa [#allocation5], 1
    %s942 = scalar_lea.sflag [#allocation5], 1
    %943 = vsyncpa %s942, 1

</llo_original>
